<compile_context>
chip_gen: v7x
topology: tpu7x:2x2x1
jax: 0.10.0
libtpu: 0.0.40
codegen_flags: <defaults>
</compile_context>

<pallas_src>
import functools
from typing import Tuple

import numpy as np
import jax
import jax.numpy as jnp
from jax.experimental import pallas as pl
from jax.experimental.pallas import tpu as pltpu

_LANE = 128


# --------------------------------------------------------------------------
# Pallas kernel: flip one (rows, WB)-wide tile of image + target along lanes.
# Reversal of the *block order* along W is handled by the input index_map.
# --------------------------------------------------------------------------
def _hflip_kernel(p_ref, img_ref, tgt_ref, img_out_ref, tgt_out_ref):
    p_rev = p_ref[...]                       # (WB, WB) bf16 anti-identity, VMEM-resident

    # ---- image: exact f32 lane reversal on the bf16 MXU --------------------
    # hi + mid + lo == x exactly; each piece is permuted by a 0/1 matrix and the
    # pieces are re-summed in f32, so the flip is bit-exact for finite data.
    x = img_ref[...]                         # (c*th, WB) f32
    hi = x.astype(jnp.bfloat16)
    r1 = x - hi.astype(jnp.float32)
    mid = r1.astype(jnp.bfloat16)
    lo = (r1 - mid.astype(jnp.float32)).astype(jnp.bfloat16)
    out = jnp.dot(hi, p_rev, preferred_element_type=jnp.float32)
    out = out + jnp.dot(mid, p_rev, preferred_element_type=jnp.float32)
    out = out + jnp.dot(lo, p_rev, preferred_element_type=jnp.float32)
    img_out_ref[...] = out

    # ---- target: 2-piece split, exact for integer labels |v| < 2**16 -------
    t = tgt_ref[...].astype(jnp.float32)     # (th, WB)
    thi = t.astype(jnp.bfloat16)
    tlo = (t - thi.astype(jnp.float32)).astype(jnp.bfloat16)
    y = jnp.dot(thi, p_rev, preferred_element_type=jnp.float32)
    y = y + jnp.dot(tlo, p_rev, preferred_element_type=jnp.float32)
    tgt_out_ref[...] = y.astype(jnp.int32)   # permuted value is an exact integer


# --------------------------------------------------------------------------
# Wrapper: fold channels into rows, pad W to a lane-dense multiple of the W
# block, launch one fused pallas_call, reshape back (free).
# --------------------------------------------------------------------------
@functools.partial(jax.jit, static_argnames=("h_tile", "w_block"))
def hflip_pair_pallas(image, target, *, h_tile: int = 128, w_block: int = 512):
    """Horizontally flip (image, target). image: (C,H,W) f32, target: (1,H,W) i32."""
    c, h, w = image.shape
    assert target.shape == (1, h, w)
    image = image.astype(jnp.float32)
    target = target.astype(jnp.int32)

    # ---- W block width: minimal lane padding, then the widest block (<= w_block,
    # multiple of 128) that divides the padded width.
    w_pad = pl.cdiv(w, _LANE) * _LANE
    k = w_pad // _LANE
    wb = _LANE
    for m in range(min(max(w_block // _LANE, 1), k), 0, -1):
        if k % m == 0:
            wb = m * _LANE
            break
    nw = w_pad // wb
    pad = w_pad - w

    # ---- H tiling (in target rows; the image block uses c*th rows).
    if h <= h_tile:
        th = h                               # full-extent block is always legal
    else:
        th = max(8, (h_tile // 8) * 8)       # keep sublane dim a multiple of 8
    nh = pl.cdiv(h, th)

    # ---- fold channel into rows (free reshape of contiguous arrays).
    img2 = image.reshape(c * h, w)
    tgt2 = target.reshape(h, w)
    if pad:
        # Left-pad so the flipped valid pixels land in output columns [0, W).
        # TODO(synk): handle the ragged left edge in-kernel (masked load /
        # BoundedSlice) to drop this extra HBM pass when W % 128 != 0.
        img2 = jnp.pad(img2, ((0, 0), (pad, 0)))
        tgt2 = jnp.pad(tgt2, ((0, 0), (pad, 0)))

    # Anti-identity lane-reversal permutation: built once per shape in the
    # wrapper (constant-folded by XLA) and kept VMEM-resident via a constant
    # index_map -- never rebuilt inside the grid.
    p_rev = jnp.eye(wb, dtype=jnp.bfloat16)[:, ::-1]

    img_f, tgt_f = pl.pallas_call(
        _hflip_kernel,
        out_shape=(
            # Unpadded outputs: the last W block is a partial edge block that
            # Pallas masks on writeback -> no post-kernel slice pass.
            jax.ShapeDtypeStruct((c * h, w), jnp.float32),
            jax.ShapeDtypeStruct((h, w), jnp.int32),
        ),
        grid_spec=pltpu.PrefetchScalarGridSpec(
            num_scalar_prefetch=0,
            grid=(nh, nw),
            in_specs=[
                # Permutation matrix: constant block index -> DMA'd once, resident.
                pl.BlockSpec((wb, wb), lambda i, j: (0, 0)),
                # Read W-blocks in REVERSED order -> DMA does the coarse flip.
                pl.BlockSpec((c * th, wb), lambda i, j: (i, nw - 1 - j)),
                pl.BlockSpec((th, wb), lambda i, j: (i, nw - 1 - j)),
            ],
            out_specs=(
                pl.BlockSpec((c * th, wb), lambda i, j: (i, j)),
                pl.BlockSpec((th, wb), lambda i, j: (i, j)),
            ),
        ),
        compiler_params=pltpu.CompilerParams(
            dimension_semantics=("parallel", "parallel")),
    )(p_rev, img2, tgt2)

    return img_f.reshape(c, h, w), tgt_f.reshape(1, h, w)


# --------------------------------------------------------------------------
# RandomHFlipPair equivalent
# --------------------------------------------------------------------------
class RandomHFlipPair:
    """Flip the image and target horizontally with a specified probability.

    Matches composer's RandomHFlipPair: flips iff np.random draw > probability.
    image: (C, H, W) float32, target: (1, H, W) int32 (PIL Images in the
    reference are represented here as CHW arrays).
    """

    def __init__(self, probability: float = 0.5, seed: int = 0):
        self.probability = probability
        # TODO(synk): the Bernoulli draw stays on the host (np.random), exactly as
        # in the reference module; it is not part of the device kernel.
        self._rng = np.random.RandomState(seed)

    def __call__(self, sample: Tuple[jax.Array, jax.Array]):
        image, target = sample
        if self._rng.random_sample() > self.probability:
            image, target = hflip_pair_pallas(image, target)
        return image, target


if __name__ == "__main__":
    key = jax.random.PRNGKey(0)
    k_img, k_tgt = jax.random.split(key)

    # Case 1: small, W needs padding (W=16 -> one partial 128-lane output block).
    image = jax.random.uniform(k_img, (4, 16, 16), dtype=jnp.float32)
    target = jax.random.randint(k_tgt, (1, 16, 16), 0, 10, dtype=jnp.int32)
    f_img, f_tgt = hflip_pair_pallas(image, target)
    jax.block_until_ready(f_img)
    jax.block_until_ready(f_tgt)
    assert f_img.shape == image.shape and f_img.dtype == jnp.float32
    assert f_tgt.shape == target.shape and f_tgt.dtype == jnp.int32
    assert bool(jnp.allclose(f_img, image[:, :, ::-1], rtol=0, atol=1e-6))
    assert bool(jnp.array_equal(f_tgt, target[:, :, ::-1]))

    # Case 2: pad-free, 256-wide single block (exercises the wide permutation).
    k3, k4 = jax.random.split(k_img)
    image2 = jax.random.uniform(k3, (3, 24, 256), dtype=jnp.float32)
    target2 = jax.random.randint(k4, (1, 24, 256), 0, 150, dtype=jnp.int32)
    f_img2, f_tgt2 = hflip_pair_pallas(image2, target2)
    jax.block_until_ready(f_img2)
    jax.block_until_ready(f_tgt2)
    assert bool(jnp.allclose(f_img2, image2[:, :, ::-1], rtol=0, atol=1e-6))
    assert bool(jnp.array_equal(f_tgt2, target2[:, :, ::-1]))

    # Case 3: multiple W blocks (coarse DMA reversal), ragged H tiling (edge
    # masking), labels up to 255.
    k5, k6 = jax.random.split(k3)
    image3 = jax.random.uniform(k5, (3, 40, 1024), dtype=jnp.float32)
    target3 = jax.random.randint(k6, (1, 40, 1024), 0, 256, dtype=jnp.int32)
    f_img3, f_tgt3 = hflip_pair_pallas(image3, target3, h_tile=16)
    jax.block_until_ready(f_img3)
    jax.block_until_ready(f_tgt3)
    assert bool(jnp.allclose(f_img3, image3[:, :, ::-1], rtol=0, atol=1e-6))
    assert bool(jnp.array_equal(f_tgt3, target3[:, :, ::-1]))

    # Module-level use: host-side draw decides whether to flip (as in the reference).
    op = RandomHFlipPair(probability=0.5, seed=0)
    out_img, out_tgt = op((image, target))
    jax.block_until_ready(out_img)
    jax.block_until_ready(out_tgt)
    assert out_img.shape == image.shape and out_tgt.shape == target.shape

    print("KERNEL_OK")
</pallas_src>

<mosaic_0001>
module attributes {stable_mosaic.version = 11 : i64} {
  func.func @_hflip_kernel(%arg0: i32, %arg1: i32, %arg2: memref<128x128xbf16, #tpu.memory_space<vmem>>, %arg3: memref<64x128xf32, #tpu.memory_space<vmem>>, %arg4: memref<16x128xi32, #tpu.memory_space<vmem>>, %arg5: memref<64x128xf32, #tpu.memory_space<vmem>>, %arg6: memref<16x128xi32, #tpu.memory_space<vmem>>) attributes {dimension_semantics = [#tpu.dimension_semantics<parallel>, #tpu.dimension_semantics<parallel>], iteration_bounds = array<i64: 1, 1>, scalar_prefetch = 0 : i64, scratch_operands = 0 : i64, tpu.core_type = #tpu.core_type<tc>, window_params = [{pipeline_mode = #tpu.pipeline_mode<synchronous>, transform_indices = @transform_0, window_bounds = array<i64: 128, 128>}, {transform_indices = @transform_1, window_bounds = array<i64: 64, 128>}, {transform_indices = @transform_2, window_bounds = array<i64: 16, 128>}, {transform_indices = @transform_3, window_bounds = array<i64: 64, 128>}, {transform_indices = @transform_4, window_bounds = array<i64: 16, 128>}]} {
    %c0 = arith.constant 0 : index
    %c0_0 = arith.constant 0 : index
    %0 = vector.load %arg2[%c0, %c0_0] : memref<128x128xbf16, #tpu.memory_space<vmem>>, vector<128x128xbf16>
    %c0_1 = arith.constant 0 : index
    %c0_2 = arith.constant 0 : index
    %1 = vector.load %arg3[%c0_1, %c0_2] : memref<64x128xf32, #tpu.memory_space<vmem>>, vector<64x128xf32>
    %2 = arith.truncf %1 : vector<64x128xf32> to vector<64x128xbf16>
    %3 = arith.extf %2 : vector<64x128xbf16> to vector<64x128xf32>
    %4 = arith.subf %1, %3 : vector<64x128xf32>
    %5 = arith.truncf %4 : vector<64x128xf32> to vector<64x128xbf16>
    %6 = arith.extf %5 : vector<64x128xbf16> to vector<64x128xf32>
    %7 = arith.subf %4, %6 : vector<64x128xf32>
    %8 = arith.truncf %7 : vector<64x128xf32> to vector<64x128xbf16>
    %cst = arith.constant dense<0.000000e+00> : vector<64x128xf32>
    %9 = tpu.matmul %2, %0, %cst {dimension_numbers = #tpu.dot_dimension_numbers<[1], [0], [0], [1], [0, 0, 1, 1], [], []>} : vector<64x128xbf16>, vector<128x128xbf16>, vector<64x128xf32> -> vector<64x128xf32>
    %cst_3 = arith.constant dense<0.000000e+00> : vector<64x128xf32>
    %10 = tpu.matmul %5, %0, %cst_3 {dimension_numbers = #tpu.dot_dimension_numbers<[1], [0], [0], [1], [0, 0, 1, 1], [], []>} : vector<64x128xbf16>, vector<128x128xbf16>, vector<64x128xf32> -> vector<64x128xf32>
    %11 = arith.addf %9, %10 : vector<64x128xf32>
    %cst_4 = arith.constant dense<0.000000e+00> : vector<64x128xf32>
    %12 = tpu.matmul %8, %0, %cst_4 {dimension_numbers = #tpu.dot_dimension_numbers<[1], [0], [0], [1], [0, 0, 1, 1], [], []>} : vector<64x128xbf16>, vector<128x128xbf16>, vector<64x128xf32> -> vector<64x128xf32>
    %13 = arith.addf %11, %12 : vector<64x128xf32>
    %c0_5 = arith.constant 0 : index
    %c0_6 = arith.constant 0 : index
    %14 = vector.load %arg5[%c0_5, %c0_6] : memref<64x128xf32, #tpu.memory_space<vmem>>, vector<64x128xf32>
    tpu.vector_store %arg5[%c0_5, %c0_6], %13 {strides = array<i32>} : memref<64x128xf32, #tpu.memory_space<vmem>>, vector<64x128xf32>,
    %c0_7 = arith.constant 0 : index
    %c0_8 = arith.constant 0 : index
    %15 = vector.load %arg4[%c0_7, %c0_8] : memref<16x128xi32, #tpu.memory_space<vmem>>, vector<16x128xi32>
    %16 = arith.sitofp %15 : vector<16x128xi32> to vector<16x128xf32>
    %17 = arith.truncf %16 : vector<16x128xf32> to vector<16x128xbf16>
    %18 = arith.extf %17 : vector<16x128xbf16> to vector<16x128xf32>
    %19 = arith.subf %16, %18 : vector<16x128xf32>
    %20 = arith.truncf %19 : vector<16x128xf32> to vector<16x128xbf16>
    %cst_9 = arith.constant dense<0.000000e+00> : vector<16x128xf32>
    %21 = tpu.matmul %17, %0, %cst_9 {dimension_numbers = #tpu.dot_dimension_numbers<[1], [0], [0], [1], [0, 0, 1, 1], [], []>} : vector<16x128xbf16>, vector<128x128xbf16>, vector<16x128xf32> -> vector<16x128xf32>
    %cst_10 = arith.constant dense<0.000000e+00> : vector<16x128xf32>
    %22 = tpu.matmul %20, %0, %cst_10 {dimension_numbers = #tpu.dot_dimension_numbers<[1], [0], [0], [1], [0, 0, 1, 1], [], []>} : vector<16x128xbf16>, vector<128x128xbf16>, vector<16x128xf32> -> vector<16x128xf32>
    %23 = arith.addf %21, %22 : vector<16x128xf32>
    %24 = arith.fptosi %23 : vector<16x128xf32> to vector<16x128xi32>
    %c0_11 = arith.constant 0 : index
    %c0_12 = arith.constant 0 : index
    %25 = vector.load %arg6[%c0_11, %c0_12] : memref<16x128xi32, #tpu.memory_space<vmem>>, vector<16x128xi32>
    tpu.vector_store %arg6[%c0_11, %c0_12], %24 {strides = array<i32>} : memref<16x128xi32, #tpu.memory_space<vmem>>, vector<16x128xi32>,
    return
  }
  func.func @transform_0(%arg0: i32, %arg1: i32) -> (i32, i32) {
    %c0_i32 = arith.constant 0 : i32
    %c0_i32_0 = arith.constant 0 : i32
    %c0_i32_1 = arith.constant 0 : i32
    return %c0_i32, %c0_i32_0 : i32, i32
  }
  func.func @transform_1(%arg0: i32, %arg1: i32) -> (i32, i32) {
    %c0_i32 = arith.constant 0 : i32
    %0 = arith.subi %c0_i32, %arg1 : i32
    %c0_i32_0 = arith.constant 0 : i32
    return %arg0, %0 : i32, i32
  }
  func.func @transform_2(%arg0: i32, %arg1: i32) -> (i32, i32) {
    %c0_i32 = arith.constant 0 : i32
    %0 = arith.subi %c0_i32, %arg1 : i32
    %c0_i32_0 = arith.constant 0 : i32
    return %arg0, %0 : i32, i32
  }
  func.func @transform_3(%arg0: i32, %arg1: i32) -> (i32, i32) {
    %c0_i32 = arith.constant 0 : i32
    return %arg0, %arg1 : i32, i32
  }
  func.func @transform_4(%arg0: i32, %arg1: i32) -> (i32, i32) {
    %c0_i32 = arith.constant 0 : i32
    return %arg0, %arg1 : i32, i32
  }
}

</mosaic_0001>

<llo_original>
// kernel: hflip_pair_pallas.1
$region0: #{hflip_pair_pallas.1}
  #allocation0 [shape = 'u32[]', space=smem, size = 0x4, offset = 0x4, fixed_abs, tag = 'smem constant byte address 0x4 - core index']
  #allocation1 [shape = 'u32[144,128]{1,0:T(1,128)}', space=vmem, size = 0x12000, scoped, tag = 'internal scratch']
  %s0 = inlined_call_operand.vmem [shape: bf16[128,128], index: 0, kind: input, shape index: {}]
  %s1 = inlined_call_operand.vmem [shape: f32[64,128], index: 1, kind: input, shape index: {}]
  %s2 = inlined_call_operand.vmem [shape: s32[16,128], index: 2, kind: input, shape index: {}]
  %s3 = inlined_call_operand.hbm [shape: f32[64,16], index: 3, kind: output, shape index: {0}]
  %s4 = inlined_call_operand.hbm [shape: s32[16,16], index: 4, kind: output, shape index: {1}]
  %5 = xla_tuple %s3, %s4
  %s6 = sld [smem:[#allocation0]]
  $region30: #{hflip_pair_pallas.1} parent=0
    _
  %s8 = ssub.s32 1, %s6
  %s9 = scalar_select 0, %s8, %s6
  $region1: #{hflip_pair_pallas.1} parent=0
    #allocation2 [shape = 'u8[32768]{0}', space=vmem, size = 0x8000, scoped, tag = 'output window, operand 0, single buffered']
    #allocation3 [shape = 's32[1]{0}', space=sflag, size = 0x4, scoped, tag = 'scoped memory for hflip_pair_pallas.1']
    #allocation4 [shape = 'u8[8192]{0}', space=vmem, size = 0x2000, scoped, tag = 'output window, operand 1, single buffered']
    #allocation5 [shape = 's32[1]{0}', space=sflag, size = 0x4, scoped, tag = 'scoped memory for hflip_pair_pallas.1']
    %10 = vsyncpa [#allocation3], 0
    %11 = vsyncpa [#allocation5], 0
    // Predicated region
    $region2: #{hflip_pair_pallas.1} parent=1 // pred_check
      _
    $region3: #{hflip_pair_pallas.1} parent=1 // pred_check_branch
      %13 = sbr.rel (0) target = $region5
    $region4: #{hflip_pair_pallas.1} parent=1 // pred_region
      _
    $region5: #{hflip_pair_pallas.1} parent=1 // pred_fallthru
      _
    // Predicated region
    $region6: #{hflip_pair_pallas.1} parent=1 // pred_check
      _
    $region7: #{hflip_pair_pallas.1} parent=1 // pred_check_branch
      %15 = sbr.rel (0) target = $region9
    $region8: #{hflip_pair_pallas.1} parent=1 // pred_region
      %s16 = ssub.s32 0, 0
      %p17 = scmp.lt.s32.totalorder %s16, 0
      %s18 = scalar_select %p17, %s16, 0
      %s19 = smul.addr %s18, 8
      %s20 = scalar_lea.vmem %s1, %s19
      %s21 = ssub.s32 0, 0
    $region9: #{hflip_pair_pallas.1} parent=1 // pred_fallthru
      _
    // Predicated region
    $region10: #{hflip_pair_pallas.1} parent=1 // pred_check
      _
    $region11: #{hflip_pair_pallas.1} parent=1 // pred_check_branch
      %23 = sbr.rel (0) target = $region13
    $region12: #{hflip_pair_pallas.1} parent=1 // pred_region
      %s24 = ssub.s32 0, 0
      %p25 = scmp.lt.s32.totalorder %s24, 0
      %s26 = scalar_select %p25, %s24, 0
      %s27 = smul.addr %s26, 8
      %s28 = scalar_lea.vmem %s2, %s27
      %s29 = ssub.s32 0, 0
    $region13: #{hflip_pair_pallas.1} parent=1 // pred_fallthru
      _
    %s30 = ssub.s32 0, 0
    %p31 = scmp.lt.s32.totalorder %s30, 0
    %s32 = scalar_select %p31, %s30, 0
    %s33 = smul.addr %s32, 8
    %s34 = scalar_lea.vmem %s1, %s33
    %s35 = ssub.s32 0, 0
    %p36 = scmp.lt.s32.totalorder %s35, 0
    %s37 = scalar_select %p36, %s35, 0
    %s38 = smul.addr %s37, 8
    %s39 = scalar_lea.vmem %s2, %s38
    %s40 = ssub.s32 0, 0
    %p41 = scmp.lt.s32.totalorder %s40, 0
    %s42 = scalar_select %p41, %s40, 0
    %s43 = smul.addr %s42, 8
    %s44 = scalar_lea.vmem %s1, %s43
    %s45 = ssub.s32 0, 0
    %s46 = ssub.s32 0, 0
    %p47 = scmp.lt.s32.totalorder %s46, 0
    %s48 = scalar_select %p47, %s46, 0
    %s49 = smul.addr %s48, 8
    %s50 = scalar_lea.vmem %s2, %s49
    %s51 = ssub.s32 0, 0
    %v53 = vld [vmem:[%s0] sm:$0xf]
    %v54 = vld [vmem:[%s0 + $0x4] sm:$0xf]
    %v55 = vld [vmem:[%s0 + $0x8] sm:$0xf]
    %v56 = vld [vmem:[%s0 + $0xc] sm:$0xf]
    %v57 = vld [vmem:[%s0 + $0x10] sm:$0xf]
    %v58 = vld [vmem:[%s0 + $0x14] sm:$0xf]
    %v59 = vld [vmem:[%s0 + $0x18] sm:$0xf]
    %v60 = vld [vmem:[%s0 + $0x1c] sm:$0xf]
    %v61 = vld [vmem:[%s0 + $0x20] sm:$0xf]
    %v62 = vld [vmem:[%s0 + $0x24] sm:$0xf]
    %v63 = vld [vmem:[%s0 + $0x28] sm:$0xf]
    %v64 = vld [vmem:[%s0 + $0x2c] sm:$0xf]
    %v65 = vld [vmem:[%s0 + $0x30] sm:$0xf]
    %v66 = vld [vmem:[%s0 + $0x34] sm:$0xf]
    %v67 = vld [vmem:[%s0 + $0x38] sm:$0xf]
    %v68 = vld [vmem:[%s0 + $0x3c] sm:$0xf]
    %v69 = vld [vmem:[%s44] sm:$0xff]
    %v70 = vld [vmem:[%s44 + $0x8] sm:$0xff]
    %v71 = vld [vmem:[%s44 + $0x10] sm:$0xff]
    %v72 = vld [vmem:[%s44 + $0x18] sm:$0xff]
    %v73 = vld [vmem:[%s44 + $0x20] sm:$0xff]
    %v74 = vld [vmem:[%s44 + $0x28] sm:$0xff]
    %v75 = vld [vmem:[%s44 + $0x30] sm:$0xff]
    %v76 = vld [vmem:[%s44 + $0x38] sm:$0xff]
    %v77 = vpack.c.bf16 %v70, %v69
    %v78 = vpack.c.bf16 %v72, %v71
    %v79 = vpack.c.bf16 %v74, %v73
    %v80 = vpack.c.bf16 %v76, %v75
    %v81 = vunpack.c.l.bf16 %v77
    %v82 = vunpack.c.h.bf16 %v77
    %v83 = vunpack.c.l.bf16 %v78
    %v84 = vunpack.c.h.bf16 %v78
    %v85 = vunpack.c.l.bf16 %v79
    %v86 = vunpack.c.h.bf16 %v79
    %v87 = vunpack.c.l.bf16 %v80
    %v88 = vunpack.c.h.bf16 %v80
    %v89 = vsub.f32 %v69, %v81
    %v90 = vsub.f32 %v70, %v82
    %v91 = vsub.f32 %v71, %v83
    %v92 = vsub.f32 %v72, %v84
    %v93 = vsub.f32 %v73, %v85
    %v94 = vsub.f32 %v74, %v86
    %v95 = vsub.f32 %v75, %v87
    %v96 = vsub.f32 %v76, %v88
    %v97 = vpack.c.bf16 %v90, %v89
    %v98 = vpack.c.bf16 %v92, %v91
    %v99 = vpack.c.bf16 %v94, %v93
    %v100 = vpack.c.bf16 %v96, %v95
    %v101 = vunpack.c.l.bf16 %v97
    %v102 = vunpack.c.h.bf16 %v97
    %v103 = vunpack.c.l.bf16 %v98
    %v104 = vunpack.c.h.bf16 %v98
    %v105 = vunpack.c.l.bf16 %v99
    %v106 = vunpack.c.h.bf16 %v99
    %v107 = vunpack.c.l.bf16 %v100
    %v108 = vunpack.c.h.bf16 %v100
    %v109 = vsub.f32 %v89, %v101
    %v110 = vsub.f32 %v90, %v102
    %v111 = vsub.f32 %v91, %v103
    %v112 = vsub.f32 %v92, %v104
    %v113 = vsub.f32 %v93, %v105
    %v114 = vsub.f32 %v94, %v106
    %v115 = vsub.f32 %v95, %v107
    %v116 = vsub.f32 %v96, %v108
    %v117 = vpack.c.bf16 %v110, %v109
    %v118 = vpack.c.bf16 %v112, %v111
    %v119 = vpack.c.bf16 %v114, %v113
    %v120 = vpack.c.bf16 %v116, %v115
    %v137 = vunpack.c.l.b16 %v53
    %v138 = vunpack.c.l.b16 %v54
    %v139 = vunpack.c.l.b16 %v55
    %v140 = vunpack.c.l.b16 %v56
    %v141 = vunpack.c.l.b16 %v57
    %v142 = vunpack.c.l.b16 %v58
    %v143 = vunpack.c.l.b16 %v59
    %v144 = vunpack.c.l.b16 %v60
    %v145 = vunpack.c.l.b16 %v61
    %v146 = vunpack.c.l.b16 %v62
    %v147 = vunpack.c.l.b16 %v63
    %v148 = vunpack.c.l.b16 %v64
    %v149 = vunpack.c.l.b16 %v65
    %v150 = vunpack.c.l.b16 %v66
    %v151 = vunpack.c.l.b16 %v67
    %v152 = vunpack.c.l.b16 %v68
    %v153 = vpack.c.b16 %v138, %v137
    %v154 = vpack.c.b16 %v140, %v139
    %v155 = vpack.c.b16 %v142, %v141
    %v156 = vpack.c.b16 %v144, %v143
    %v157 = vpack.c.b16 %v146, %v145
    %v158 = vpack.c.b16 %v148, %v147
    %v159 = vpack.c.b16 %v150, %v149
    %v160 = vpack.c.b16 %v152, %v151
    %169 = vmatprep.subr.bf16.mxu0 0
    %170 = vmatpush1.bf16.msra.mxu0 %v153
    %171 = vmatprep.subr.bf16.mxu0 0
    %172 = vmatpush1.bf16.msra.mxu0 %v154
    %173 = vmatprep.subr.bf16.mxu0 0
    %174 = vmatpush1.bf16.msra.mxu0 %v155
    %175 = vmatprep.subr.bf16.mxu0 0
    %176 = vmatpush1.bf16.msra.mxu0 %v156
    %177 = vmatprep.subr.bf16.mxu0 0
    %178 = vmatpush1.bf16.msra.mxu0 %v157
    %179 = vmatprep.subr.bf16.mxu0 0
    %180 = vmatpush1.bf16.msra.mxu0 %v158
    %181 = vmatprep.subr.bf16.mxu0 0
    %182 = vmatpush1.bf16.msra.mxu0 %v159
    %183 = vmatprep.subr.bf16.mxu0 0
    %184 = vmatpush1.bf16.msra.mxu0 %v160
    %185 = vmatprep.subr.bf16.mxu0 0
    %186 = vmatpush1.bf16.msra.mxu0 0
    %187 = vmatprep.subr.bf16.mxu0 0
    %188 = vmatpush1.bf16.msra.mxu0 0
    %189 = vmatprep.subr.bf16.mxu0 0
    %190 = vmatpush1.bf16.msra.mxu0 0
    %191 = vmatprep.subr.bf16.mxu0 0
    %192 = vmatpush1.bf16.msra.mxu0 0
    %193 = vmatprep.subr.bf16.mxu0 0
    %194 = vmatpush1.bf16.msra.mxu0 0
    %195 = vmatprep.subr.bf16.mxu0 0
    %196 = vmatpush1.bf16.msra.mxu0 0
    %197 = vmatprep.subr.bf16.mxu0 0
    %198 = vmatpush1.bf16.msra.mxu0 0
    %199 = vmatprep.subr.bf16.mxu0 0
    %200 = vmatpush1.bf16.msra.mxu0 0
    %201 = vmatprep.mubr.bf16.mxu0 0
    %202 = vmatmul.mubr.bf16.gmra.mrb[0].mxu0 %v97
    %v203 = vpop.f32.mrb[0].mxu0
    %v204 = vadd.f32 0.0, %v203
    %v205 = vpop.f32.mrb[0].mxu0
    %v206 = vpop.f32.mrb[0].mxu0
    %v207 = vadd.f32 0.0, %v206
    %v208 = vpop.f32.mrb[0].mxu0
    %209 = vmatprep.mubr.bf16.mxu0 0
    %210 = vmatmul.mubr.bf16.gmra.mrb[0].mxu0 %v98
    %v211 = vpop.f32.mrb[0].mxu0
    %v212 = vadd.f32 0.0, %v211
    %v213 = vpop.f32.mrb[0].mxu0
    %v214 = vpop.f32.mrb[0].mxu0
    %v215 = vadd.f32 0.0, %v214
    %v216 = vpop.f32.mrb[0].mxu0
    %217 = vmatprep.mubr.bf16.mxu0 0
    %218 = vmatmul.mubr.bf16.gmra.mrb[0].mxu0 %v99
    %v219 = vpop.f32.mrb[0].mxu0
    %v220 = vadd.f32 0.0, %v219
    %v221 = vpop.f32.mrb[0].mxu0
    %v222 = vpop.f32.mrb[0].mxu0
    %v223 = vadd.f32 0.0, %v222
    %v224 = vpop.f32.mrb[0].mxu0
    %225 = vmatprep.mubr.bf16.mxu0 0
    %226 = vmatmul.mubr.bf16.gmra.mrb[0].mxu0 %v100
    %v227 = vpop.f32.mrb[0].mxu0
    %v228 = vadd.f32 0.0, %v227
    %v229 = vpop.f32.mrb[0].mxu0
    %v230 = vpop.f32.mrb[0].mxu0
    %v231 = vadd.f32 0.0, %v230
    %v232 = vpop.f32.mrb[0].mxu0
    %233 = vdwg.mxu0
    %234 = vmatprep.subr.bf16.mxu0 0
    %235 = vmatpush1.bf16.msra.mxu0 %v153
    %236 = vmatprep.subr.bf16.mxu0 0
    %237 = vmatpush1.bf16.msra.mxu0 %v154
    %238 = vmatprep.subr.bf16.mxu0 0
    %239 = vmatpush1.bf16.msra.mxu0 %v155
    %240 = vmatprep.subr.bf16.mxu0 0
    %241 = vmatpush1.bf16.msra.mxu0 %v156
    %242 = vmatprep.subr.bf16.mxu0 0
    %243 = vmatpush1.bf16.msra.mxu0 %v157
    %244 = vmatprep.subr.bf16.mxu0 0
    %245 = vmatpush1.bf16.msra.mxu0 %v158
    %246 = vmatprep.subr.bf16.mxu0 0
    %247 = vmatpush1.bf16.msra.mxu0 %v159
    %248 = vmatprep.subr.bf16.mxu0 0
    %249 = vmatpush1.bf16.msra.mxu0 %v160
    %250 = vmatprep.subr.bf16.mxu0 0
    %251 = vmatpush1.bf16.msra.mxu0 0
    %252 = vmatprep.subr.bf16.mxu0 0
    %253 = vmatpush1.bf16.msra.mxu0 0
    %254 = vmatprep.subr.bf16.mxu0 0
    %255 = vmatpush1.bf16.msra.mxu0 0
    %256 = vmatprep.subr.bf16.mxu0 0
    %257 = vmatpush1.bf16.msra.mxu0 0
    %258 = vmatprep.subr.bf16.mxu0 0
    %259 = vmatpush1.bf16.msra.mxu0 0
    %260 = vmatprep.subr.bf16.mxu0 0
    %261 = vmatpush1.bf16.msra.mxu0 0
    %262 = vmatprep.subr.bf16.mxu0 0
    %263 = vmatpush1.bf16.msra.mxu0 0
    %264 = vmatprep.subr.bf16.mxu0 0
    %265 = vmatpush1.bf16.msra.mxu0 0
    %266 = vmatprep.mubr.bf16.mxu0 0
    %267 = vmatmul.mubr.bf16.gmra.mrb[0].mxu0 %v77
    %v268 = vpop.f32.mrb[0].mxu0
    %v269 = vadd.f32 %v204, %v268
    %v270 = vpop.f32.mrb[0].mxu0
    %v271 = vpop.f32.mrb[0].mxu0
    %v272 = vadd.f32 %v207, %v271
    %v273 = vpop.f32.mrb[0].mxu0
    %274 = vmatprep.mubr.bf16.mxu0 0
    %275 = vmatmul.mubr.bf16.gmra.mrb[0].mxu0 %v78
    %v276 = vpop.f32.mrb[0].mxu0
    %v277 = vadd.f32 %v212, %v276
    %v278 = vpop.f32.mrb[0].mxu0
    %v279 = vpop.f32.mrb[0].mxu0
    %v280 = vadd.f32 %v215, %v279
    %v281 = vpop.f32.mrb[0].mxu0
    %282 = vmatprep.mubr.bf16.mxu0 0
    %283 = vmatmul.mubr.bf16.gmra.mrb[0].mxu0 %v79
    %v284 = vpop.f32.mrb[0].mxu0
    %v285 = vadd.f32 %v220, %v284
    %v286 = vpop.f32.mrb[0].mxu0
    %v287 = vpop.f32.mrb[0].mxu0
    %v288 = vadd.f32 %v223, %v287
    %v289 = vpop.f32.mrb[0].mxu0
    %290 = vmatprep.mubr.bf16.mxu0 0
    %291 = vmatmul.mubr.bf16.gmra.mrb[0].mxu0 %v80
    %v292 = vpop.f32.mrb[0].mxu0
    %v293 = vadd.f32 %v228, %v292
    %v294 = vpop.f32.mrb[0].mxu0
    %v295 = vpop.f32.mrb[0].mxu0
    %v296 = vadd.f32 %v231, %v295
    %v297 = vpop.f32.mrb[0].mxu0
    %298 = vdwg.mxu0
    %299 = vmatprep.subr.bf16.mxu0 0
    %300 = vmatpush1.bf16.msra.mxu0 %v153
    %301 = vmatprep.subr.bf16.mxu0 0
    %302 = vmatpush1.bf16.msra.mxu0 %v154
    %303 = vmatprep.subr.bf16.mxu0 0
    %304 = vmatpush1.bf16.msra.mxu0 %v155
    %305 = vmatprep.subr.bf16.mxu0 0
    %306 = vmatpush1.bf16.msra.mxu0 %v156
    %307 = vmatprep.subr.bf16.mxu0 0
    %308 = vmatpush1.bf16.msra.mxu0 %v157
    %309 = vmatprep.subr.bf16.mxu0 0
    %310 = vmatpush1.bf16.msra.mxu0 %v158
    %311 = vmatprep.subr.bf16.mxu0 0
    %312 = vmatpush1.bf16.msra.mxu0 %v159
    %313 = vmatprep.subr.bf16.mxu0 0
    %314 = vmatpush1.bf16.msra.mxu0 %v160
    %315 = vmatprep.subr.bf16.mxu0 0
    %316 = vmatpush1.bf16.msra.mxu0 0
    %317 = vmatprep.subr.bf16.mxu0 0
    %318 = vmatpush1.bf16.msra.mxu0 0
    %319 = vmatprep.subr.bf16.mxu0 0
    %320 = vmatpush1.bf16.msra.mxu0 0
    %321 = vmatprep.subr.bf16.mxu0 0
    %322 = vmatpush1.bf16.msra.mxu0 0
    %323 = vmatprep.subr.bf16.mxu0 0
    %324 = vmatpush1.bf16.msra.mxu0 0
    %325 = vmatprep.subr.bf16.mxu0 0
    %326 = vmatpush1.bf16.msra.mxu0 0
    %327 = vmatprep.subr.bf16.mxu0 0
    %328 = vmatpush1.bf16.msra.mxu0 0
    %329 = vmatprep.subr.bf16.mxu0 0
    %330 = vmatpush1.bf16.msra.mxu0 0
    %331 = vmatprep.mubr.bf16.mxu0 0
    %332 = vmatmul.mubr.bf16.gmra.mrb[0].mxu0 %v117
    %v333 = vpop.f32.mrb[0].mxu0
    %v334 = vadd.f32 0.0, %v333
    %v335 = vpop.f32.mrb[0].mxu0
    %v336 = vpop.f32.mrb[0].mxu0
    %v337 = vadd.f32 0.0, %v336
    %v338 = vpop.f32.mrb[0].mxu0
    %339 = vmatprep.mubr.bf16.mxu0 0
    %340 = vmatmul.mubr.bf16.gmra.mrb[0].mxu0 %v118
    %v341 = vpop.f32.mrb[0].mxu0
    %v342 = vadd.f32 0.0, %v341
    %v343 = vpop.f32.mrb[0].mxu0
    %v344 = vpop.f32.mrb[0].mxu0
    %v345 = vadd.f32 0.0, %v344
    %v346 = vpop.f32.mrb[0].mxu0
    %347 = vmatprep.mubr.bf16.mxu0 0
    %348 = vmatmul.mubr.bf16.gmra.mrb[0].mxu0 %v119
    %v349 = vpop.f32.mrb[0].mxu0
    %v350 = vadd.f32 0.0, %v349
    %v351 = vpop.f32.mrb[0].mxu0
    %v352 = vpop.f32.mrb[0].mxu0
    %v353 = vadd.f32 0.0, %v352
    %v354 = vpop.f32.mrb[0].mxu0
    %355 = vmatprep.mubr.bf16.mxu0 0
    %356 = vmatmul.mubr.bf16.gmra.mrb[0].mxu0 %v120
    %v357 = vpop.f32.mrb[0].mxu0
    %v358 = vadd.f32 0.0, %v357
    %v359 = vpop.f32.mrb[0].mxu0
    %v360 = vpop.f32.mrb[0].mxu0
    %v361 = vadd.f32 0.0, %v360
    %v362 = vpop.f32.mrb[0].mxu0
    %363 = vdwg.mxu0
    %v364 = vadd.f32 %v269, %v334
    %v365 = vadd.f32 %v272, %v337
    %v366 = vadd.f32 %v277, %v342
    %v367 = vadd.f32 %v280, %v345
    %v368 = vadd.f32 %v285, %v350
    %v369 = vadd.f32 %v288, %v353
    %v370 = vadd.f32 %v293, %v358
    %v371 = vadd.f32 %v296, %v361
    %372 = vst [vmem:[#allocation2] sm:$0xff] %v364
    %373 = vst [vmem:[#allocation2 + $0x8] sm:$0xff] %v365
    %374 = vst [vmem:[#allocation2 + $0x10] sm:$0xff] %v366
    %375 = vst [vmem:[#allocation2 + $0x18] sm:$0xff] %v367
    %376 = vst [vmem:[#allocation2 + $0x20] sm:$0xff] %v368
    %377 = vst [vmem:[#allocation2 + $0x28] sm:$0xff] %v369
    %378 = vst [vmem:[#allocation2 + $0x30] sm:$0xff] %v370
    %379 = vst [vmem:[#allocation2 + $0x38] sm:$0xff] %v371
    %v380 = vld [vmem:[%s50] sm:$0xff]
    %v381 = vld [vmem:[%s50 + $0x8] sm:$0xff]
    %v382 = vcvt.s32.f32 %v380
    %v383 = vcvt.s32.f32 %v381
    %v384 = vpack.c.bf16 %v383, %v382
    %v385 = vunpack.c.l.bf16 %v384
    %v386 = vunpack.c.h.bf16 %v384
    %v387 = vsub.f32 %v382, %v385
    %v388 = vsub.f32 %v383, %v386
    %v389 = vpack.c.bf16 %v388, %v387
    %390 = vmatprep.subr.bf16.mxu0 0
    %391 = vmatpush1.bf16.msra.mxu0 %v153
    %392 = vmatprep.subr.bf16.mxu0 0
    %393 = vmatpush1.bf16.msra.mxu0 %v154
    %394 = vmatprep.subr.bf16.mxu0 0
    %395 = vmatpush1.bf16.msra.mxu0 %v155
    %396 = vmatprep.subr.bf16.mxu0 0
    %397 = vmatpush1.bf16.msra.mxu0 %v156
    %398 = vmatprep.subr.bf16.mxu0 0
    %399 = vmatpush1.bf16.msra.mxu0 %v157
    %400 = vmatprep.subr.bf16.mxu0 0
    %401 = vmatpush1.bf16.msra.mxu0 %v158
    %402 = vmatprep.subr.bf16.mxu0 0
    %403 = vmatpush1.bf16.msra.mxu0 %v159
    %404 = vmatprep.subr.bf16.mxu0 0
    %405 = vmatpush1.bf16.msra.mxu0 %v160
    %406 = vmatprep.subr.bf16.mxu0 0
    %407 = vmatpush1.bf16.msra.mxu0 0
    %408 = vmatprep.subr.bf16.mxu0 0
    %409 = vmatpush1.bf16.msra.mxu0 0
    %410 = vmatprep.subr.bf16.mxu0 0
    %411 = vmatpush1.bf16.msra.mxu0 0
    %412 = vmatprep.subr.bf16.mxu0 0
    %413 = vmatpush1.bf16.msra.mxu0 0
    %414 = vmatprep.subr.bf16.mxu0 0
    %415 = vmatpush1.bf16.msra.mxu0 0
    %416 = vmatprep.subr.bf16.mxu0 0
    %417 = vmatpush1.bf16.msra.mxu0 0
    %418 = vmatprep.subr.bf16.mxu0 0
    %419 = vmatpush1.bf16.msra.mxu0 0
    %420 = vmatprep.subr.bf16.mxu0 0
    %421 = vmatpush1.bf16.msra.mxu0 0
    %422 = vmatprep.mubr.bf16.mxu0 0
    %423 = vmatmul.mubr.bf16.gmra.mrb[0].mxu0 %v389
    %v424 = vpop.f32.mrb[0].mxu0
    %v425 = vadd.f32 0.0, %v424
    %v426 = vpop.f32.mrb[0].mxu0
    %v427 = vpop.f32.mrb[0].mxu0
    %v428 = vadd.f32 0.0, %v427
    %v429 = vpop.f32.mrb[0].mxu0
    %430 = vdwg.mxu0
    %431 = vmatprep.subr.bf16.mxu0 0
    %432 = vmatpush1.bf16.msra.mxu0 %v153
    %433 = vmatprep.subr.bf16.mxu0 0
    %434 = vmatpush1.bf16.msra.mxu0 %v154
    %435 = vmatprep.subr.bf16.mxu0 0
    %436 = vmatpush1.bf16.msra.mxu0 %v155
    %437 = vmatprep.subr.bf16.mxu0 0
    %438 = vmatpush1.bf16.msra.mxu0 %v156
    %439 = vmatprep.subr.bf16.mxu0 0
    %440 = vmatpush1.bf16.msra.mxu0 %v157
    %441 = vmatprep.subr.bf16.mxu0 0
    %442 = vmatpush1.bf16.msra.mxu0 %v158
    %443 = vmatprep.subr.bf16.mxu0 0
    %444 = vmatpush1.bf16.msra.mxu0 %v159
    %445 = vmatprep.subr.bf16.mxu0 0
    %446 = vmatpush1.bf16.msra.mxu0 %v160
    %447 = vmatprep.subr.bf16.mxu0 0
    %448 = vmatpush1.bf16.msra.mxu0 0
    %449 = vmatprep.subr.bf16.mxu0 0
    %450 = vmatpush1.bf16.msra.mxu0 0
    %451 = vmatprep.subr.bf16.mxu0 0
    %452 = vmatpush1.bf16.msra.mxu0 0
    %453 = vmatprep.subr.bf16.mxu0 0
    %454 = vmatpush1.bf16.msra.mxu0 0
    %455 = vmatprep.subr.bf16.mxu0 0
    %456 = vmatpush1.bf16.msra.mxu0 0
    %457 = vmatprep.subr.bf16.mxu0 0
    %458 = vmatpush1.bf16.msra.mxu0 0
    %459 = vmatprep.subr.bf16.mxu0 0
    %460 = vmatpush1.bf16.msra.mxu0 0
    %461 = vmatprep.subr.bf16.mxu0 0
    %462 = vmatpush1.bf16.msra.mxu0 0
    %463 = vmatprep.mubr.bf16.mxu0 0
    %464 = vmatmul.mubr.bf16.gmra.mrb[0].mxu0 %v384
    %v465 = vpop.f32.mrb[0].mxu0
    %v466 = vadd.f32 %v425, %v465
    %v467 = vpop.f32.mrb[0].mxu0
    %v468 = vpop.f32.mrb[0].mxu0
    %v469 = vadd.f32 %v428, %v468
    %v470 = vpop.f32.mrb[0].mxu0
    %471 = vdwg.mxu0
    %v472 = vcvt.f32.s32.to.zero.pseudo %v466
    %v473 = vcvt.f32.s32.to.zero.pseudo %v469
    %474 = vst [vmem:[#allocation4] sm:$0xff] %v472
    %475 = vst [vmem:[#allocation4 + $0x8] sm:$0xff] %v473
    // Predicated region
    $region14: #{hflip_pair_pallas.1} parent=1 // pred_check
      _
    $region15: #{hflip_pair_pallas.1} parent=1 // pred_check_branch
      %477 = sbr.rel (0) target = $region17
    $region16: #{hflip_pair_pallas.1} parent=1 // pred_region
      %s479 = ssub.s32 1024, 1024
      %480 = vsyncadd [#allocation3], %s479
      %s481 = sshll.u32 [#allocation2], 4
      %s482 = int_to_ptr.vmem [resolvable:$true] %s481
      %487 = dma.vmem_to_hbm [thread:$0]  %s482, 1024, %s3, [#allocation3], 128, 128, 8
    $region17: #{hflip_pair_pallas.1} parent=1 // pred_fallthru
      _
    // Predicated region
    $region18: #{hflip_pair_pallas.1} parent=1 // pred_check
      _
    $region19: #{hflip_pair_pallas.1} parent=1 // pred_check_branch
      %489 = sbr.rel (0) target = $region21
    $region20: #{hflip_pair_pallas.1} parent=1 // pred_region
      %s491 = ssub.s32 256, 256
      %492 = vsyncadd [#allocation5], %s491
      %s493 = sshll.u32 [#allocation4], 4
      %s494 = int_to_ptr.vmem [resolvable:$true] %s493
      %499 = dma.vmem_to_hbm [thread:$0]  %s494, 256, %s4, [#allocation5], 128, 128, 8
    $region21: #{hflip_pair_pallas.1} parent=1 // pred_fallthru
      _
    // Predicated region
    $region22: #{hflip_pair_pallas.1} parent=1 // pred_check
      _
    $region23: #{hflip_pair_pallas.1} parent=1 // pred_check_branch
      %501 = sbr.rel (0) target = $region25
    $region24: #{hflip_pair_pallas.1} parent=1 // pred_region
      %502 = dma.done [#allocation3], 1024
    $region25: #{hflip_pair_pallas.1} parent=1 // pred_fallthru
      _
    // Predicated region
    $region26: #{hflip_pair_pallas.1} parent=1 // pred_check
      _
    $region27: #{hflip_pair_pallas.1} parent=1 // pred_check_branch
      %504 = sbr.rel (0) target = $region29
    $region28: #{hflip_pair_pallas.1} parent=1 // pred_region
      %505 = dma.done [#allocation5], 256
    $region29: #{hflip_pair_pallas.1} parent=1 // pred_fallthru
      _
    %506 = vsyncpa [#allocation3], 1
    %507 = vsyncpa [#allocation5], 1

</llo_original>
